<compile_context>
chip_gen: v6e
topology: v6e:2x2x1
jax: 0.10.0
libtpu: 0.0.40
codegen_flags: <defaults>
</compile_context>

<pallas_src>
import functools

import jax
import jax.numpy as jnp
from jax.experimental import pallas as pl
from jax.experimental.pallas import tpu as pltpu


def _round_up(x, m):
    return (x + m - 1) // m * m


def _mlp_kernel(x_ref, w1_ref, b1_ref, w2_ref, b2_ref, o_ref):
    # Block 0: nn.Linear(20, 256). In-kernel f32->bf16 cast, MXU matmul, f32 acc.
    x = x_ref[...].astype(jnp.bfloat16)
    h = jnp.dot(x, w1_ref[...], preferred_element_type=jnp.float32)
    # Block 1: nn.ReLU() — bias add + ReLU in f32 on the VPU.
    h = jnp.maximum(h + b1_ref[...], 0.0)
    # Block 2: nn.Linear(256, 10) — output kept at the 10 real lanes (no 128-lane pad),
    # so writeback is 40 B/row instead of 512 B/row.
    out = jnp.dot(h.astype(jnp.bfloat16), w2_ref[...],
                  preferred_element_type=jnp.float32)
    o_ref[...] = out + b2_ref[...]


@functools.partial(jax.jit, static_argnames=("tm",))
def my_sequential_forward(x, w1, b1, w2, b2, *, tm=2048):
    """Fused Linear -> ReLU -> Linear in one Pallas TPU kernel.

    x:  (N, D_in) f32
    w1: (D_in, H), b1: (1, H)    (weights stored as (in, out), transposed vs nn.Linear)
    w2: (H, D_out), b2: (1, D_out)
    returns (N, D_out) f32
    """
    n, d_in = x.shape
    d_hidden = w1.shape[1]
    d_out = w2.shape[1]

    # ---- batch tiling (all static Python math under jit) ----
    n_up = _round_up(n, 8)
    steps = pl.cdiv(n_up, min(tm, n_up))
    # v7x megacore: need >=2 grid steps to shard across both TensorCores; a second
    # step is near-free on v5e/v6e, so do it unconditionally for big batches.
    if steps == 1 and n_up >= 1024:
        steps = 2
    tm_eff = _round_up(pl.cdiv(n_up, steps), 8)
    n_pad = tm_eff * steps

    # Row-only padding of x (kept f32: no dtype-convert copy of the activations).
    if n_pad != n:
        x = jnp.pad(x, ((0, n_pad - n), (0, 0)))

    # bf16 MXU operands for the (tiny) weights; biases stay f32.
    w1_b = w1.astype(jnp.bfloat16)
    w2_b = w2.astype(jnp.bfloat16)
    b1_f = b1.astype(jnp.float32).reshape(1, d_hidden)
    b2_f = b2.astype(jnp.float32).reshape(1, d_out)

    flops = 2 * n_pad * (d_in * d_hidden + d_hidden * d_out)
    bytes_accessed = (n_pad * d_in * 4                      # x (f32, read)
                      + d_in * d_hidden * 2 + d_hidden * 4  # w1 (bf16) + b1 (f32)
                      + d_hidden * d_out * 2 + d_out * 4    # w2 (bf16) + b2 (f32)
                      + n_pad * d_out * 4)                  # output (f32, write)

    out = pl.pallas_call(
        _mlp_kernel,
        out_shape=jax.ShapeDtypeStruct((n_pad, d_out), jnp.float32),
        grid=(steps,),
        in_specs=[
            # Activations: tiled over the batch axis (pipelined DMA).
            pl.BlockSpec((tm_eff, d_in), lambda i: (i, 0)),
            # Weights / biases: full blocks, same index every step -> VMEM-resident.
            pl.BlockSpec((d_in, d_hidden), lambda i: (0, 0)),
            pl.BlockSpec((1, d_hidden), lambda i: (0, 0)),
            pl.BlockSpec((d_hidden, d_out), lambda i: (0, 0)),
            pl.BlockSpec((1, d_out), lambda i: (0, 0)),
        ],
        out_specs=pl.BlockSpec((tm_eff, d_out), lambda i: (i, 0)),
        compiler_params=pltpu.CompilerParams(
            dimension_semantics=("parallel",),   # megacore sharding on v7x
        ),
        cost_estimate=pl.CostEstimate(
            flops=int(flops),
            transcendentals=0,
            bytes_accessed=int(bytes_accessed)),
    )(x, w1_b, b1_f, w2_b, b2_f)

    return out[:n, :]


def init_params(key, d_in=20, hidden=256, d_out=10):
    """Deterministic init mimicking nn.Linear's U(-1/sqrt(fan_in), 1/sqrt(fan_in))."""
    k1, k2, k3, k4 = jax.random.split(key, 4)
    bound1 = 1.0 / jnp.sqrt(d_in)
    bound2 = 1.0 / jnp.sqrt(hidden)
    w1 = jax.random.uniform(k1, (d_in, hidden), jnp.float32, -bound1, bound1)
    b1 = jax.random.uniform(k2, (1, hidden), jnp.float32, -bound1, bound1)
    w2 = jax.random.uniform(k3, (hidden, d_out), jnp.float32, -bound2, bound2)
    b2 = jax.random.uniform(k4, (1, d_out), jnp.float32, -bound2, bound2)
    return w1, b1, w2, b2


def _reference(x, w1, b1, w2, b2):
    """Pure-JAX reference emulating the kernel's bf16-in / f32-accumulate math."""
    xb = x.astype(jnp.bfloat16).astype(jnp.float32)
    w1b = w1.astype(jnp.bfloat16).astype(jnp.float32)
    w2b = w2.astype(jnp.bfloat16).astype(jnp.float32)
    h = jnp.maximum(xb @ w1b + b1, 0.0)
    return h.astype(jnp.bfloat16).astype(jnp.float32) @ w2b + b2


if __name__ == "__main__":
    key = jax.random.PRNGKey(0)
    k_x, k_p, k_x2 = jax.random.split(key, 3)

    w1, b1, w2, b2 = init_params(k_p)

    # Canonical spec shape: X = torch.rand(2, 20)  -> uniform [0, 1)
    x = jax.random.uniform(k_x, (2, 20), jnp.float32)
    out = jax.block_until_ready(my_sequential_forward(x, w1, b1, w2, b2))
    ref = _reference(x, w1, b1, w2, b2)
    assert out.shape == (2, 10)
    assert jnp.allclose(out, ref, atol=2e-3, rtol=2e-3)

    # Exercise the tiled/pipelined path (grid > 1, batch row padding).
    x2 = jax.random.uniform(k_x2, (300, 20), jnp.float32)
    out2 = jax.block_until_ready(my_sequential_forward(x2, w1, b1, w2, b2, tm=128))
    ref2 = _reference(x2, w1, b1, w2, b2)
    assert out2.shape == (300, 10)
    assert jnp.allclose(out2, ref2, atol=2e-3, rtol=2e-3)

    print("KERNEL_OK")
</pallas_src>

<mosaic_0001>
module attributes {stable_mosaic.version = 11 : i64} {
  func.func @_mlp_kernel(%arg0: i32, %arg1: memref<8x20xf32, #tpu.memory_space<vmem>>, %arg2: memref<20x256xbf16, #tpu.memory_space<vmem>>, %arg3: memref<1x256xf32, #tpu.memory_space<vmem>>, %arg4: memref<256x10xbf16, #tpu.memory_space<vmem>>, %arg5: memref<1x10xf32, #tpu.memory_space<vmem>>, %arg6: memref<8x10xf32, #tpu.memory_space<vmem>>) attributes {dimension_semantics = [#tpu.dimension_semantics<parallel>], iteration_bounds = array<i64: 1>, scalar_prefetch = 0 : i64, scratch_operands = 0 : i64, tpu.core_type = #tpu.core_type<tc>, window_params = [{transform_indices = @transform_0, window_bounds = array<i64: 8, 20>}, {pipeline_mode = #tpu.pipeline_mode<synchronous>, transform_indices = @transform_1, window_bounds = array<i64: 20, 256>}, {pipeline_mode = #tpu.pipeline_mode<synchronous>, transform_indices = @transform_2, window_bounds = array<i64: 1, 256>}, {pipeline_mode = #tpu.pipeline_mode<synchronous>, transform_indices = @transform_3, window_bounds = array<i64: 256, 10>}, {pipeline_mode = #tpu.pipeline_mode<synchronous>, transform_indices = @transform_4, window_bounds = array<i64: 1, 10>}, {transform_indices = @transform_5, window_bounds = array<i64: 8, 10>}]} {
    %c0 = arith.constant 0 : index
    %c0_0 = arith.constant 0 : index
    %0 = vector.load %arg1[%c0, %c0_0] : memref<8x20xf32, #tpu.memory_space<vmem>>, vector<8x20xf32>
    %1 = arith.truncf %0 : vector<8x20xf32> to vector<8x20xbf16>
    %c0_1 = arith.constant 0 : index
    %c0_2 = arith.constant 0 : index
    %2 = vector.load %arg2[%c0_1, %c0_2] : memref<20x256xbf16, #tpu.memory_space<vmem>>, vector<20x256xbf16>
    %cst = arith.constant dense<0.000000e+00> : vector<8x256xf32>
    %3 = tpu.matmul %1, %2, %cst {dimension_numbers = #tpu.dot_dimension_numbers<[1], [0], [0], [1], [0, 0, 1, 1], [], []>} : vector<8x20xbf16>, vector<20x256xbf16>, vector<8x256xf32> -> vector<8x256xf32>
    %c0_3 = arith.constant 0 : index
    %c0_4 = arith.constant 0 : index
    %4 = vector.load %arg3[%c0_3, %c0_4] : memref<1x256xf32, #tpu.memory_space<vmem>>, vector<1x256xf32>
    %5 = vector.broadcast %4 : vector<1x256xf32> to vector<8x256xf32>
    %6 = arith.addf %3, %5 : vector<8x256xf32>
    %cst_5 = arith.constant 0.000000e+00 : f32
    %7 = vector.broadcast %cst_5 : f32 to vector<8x256xf32>
    %8 = arith.maximumf %6, %7 : vector<8x256xf32>
    %9 = arith.truncf %8 : vector<8x256xf32> to vector<8x256xbf16>
    %c0_6 = arith.constant 0 : index
    %c0_7 = arith.constant 0 : index
    %10 = vector.load %arg4[%c0_6, %c0_7] : memref<256x10xbf16, #tpu.memory_space<vmem>>, vector<256x10xbf16>
    %cst_8 = arith.constant dense<0.000000e+00> : vector<8x10xf32>
    %11 = tpu.matmul %9, %10, %cst_8 {dimension_numbers = #tpu.dot_dimension_numbers<[1], [0], [0], [1], [0, 0, 1, 1], [], []>} : vector<8x256xbf16>, vector<256x10xbf16>, vector<8x10xf32> -> vector<8x10xf32>
    %c0_9 = arith.constant 0 : index
    %c0_10 = arith.constant 0 : index
    %12 = vector.load %arg5[%c0_9, %c0_10] : memref<1x10xf32, #tpu.memory_space<vmem>>, vector<1x10xf32>
    %13 = vector.broadcast %12 : vector<1x10xf32> to vector<8x10xf32>
    %14 = arith.addf %11, %13 : vector<8x10xf32>
    %c0_11 = arith.constant 0 : index
    %c0_12 = arith.constant 0 : index
    %15 = vector.load %arg6[%c0_11, %c0_12] : memref<8x10xf32, #tpu.memory_space<vmem>>, vector<8x10xf32>
    tpu.vector_store %arg6[%c0_11, %c0_12], %14 {strides = array<i32>} : memref<8x10xf32, #tpu.memory_space<vmem>>, vector<8x10xf32>,
    return
  }
  func.func @transform_0(%arg0: i32) -> (i32, i32) {
    %c0_i32 = arith.constant 0 : i32
    %c0_i32_0 = arith.constant 0 : i32
    return %arg0, %c0_i32 : i32, i32
  }
  func.func @transform_1(%arg0: i32) -> (i32, i32) {
    %c0_i32 = arith.constant 0 : i32
    %c0_i32_0 = arith.constant 0 : i32
    %c0_i32_1 = arith.constant 0 : i32
    return %c0_i32, %c0_i32_0 : i32, i32
  }
  func.func @transform_2(%arg0: i32) -> (i32, i32) {
    %c0_i32 = arith.constant 0 : i32
    %c0_i32_0 = arith.constant 0 : i32
    %c0_i32_1 = arith.constant 0 : i32
    return %c0_i32, %c0_i32_0 : i32, i32
  }
  func.func @transform_3(%arg0: i32) -> (i32, i32) {
    %c0_i32 = arith.constant 0 : i32
    %c0_i32_0 = arith.constant 0 : i32
    %c0_i32_1 = arith.constant 0 : i32
    return %c0_i32, %c0_i32_0 : i32, i32
  }
  func.func @transform_4(%arg0: i32) -> (i32, i32) {
    %c0_i32 = arith.constant 0 : i32
    %c0_i32_0 = arith.constant 0 : i32
    %c0_i32_1 = arith.constant 0 : i32
    return %c0_i32, %c0_i32_0 : i32, i32
  }
  func.func @transform_5(%arg0: i32) -> (i32, i32) {
    %c0_i32 = arith.constant 0 : i32
    %c0_i32_0 = arith.constant 0 : i32
    return %arg0, %c0_i32 : i32, i32
  }
}

</mosaic_0001>

<llo_original>
// kernel: my_sequential_forward.1
$region0: #{my_sequential_forward.1}
  #allocation0 [shape = 'u32[]', space=smem, size = 0x4, offset = 0x4, fixed_abs, tag = 'smem constant byte address 0x4 - core index']
  #allocation1 [shape = 'u32[144,128]{1,0:T(1,128)}', space=vmem, size = 0x12000, scoped, tag = 'internal scratch']
  %s0 = inlined_call_operand.vmem [shape: f32[8,20], index: 0, kind: input, shape index: {}]
  %s1 = inlined_call_operand.vmem [shape: bf16[20,256], index: 1, kind: input, shape index: {}]
  %s2 = inlined_call_operand.vmem [shape: f32[1,256], index: 2, kind: input, shape index: {}]
  %s3 = inlined_call_operand.vmem [shape: bf16[256,10], index: 3, kind: input, shape index: {}]
  %s4 = inlined_call_operand.vmem [shape: f32[1,10], index: 4, kind: input, shape index: {}]
  %s5 = inlined_call_operand.vmem [shape: f32[8,10], index: 5, kind: output, shape index: {}]
  %s6 = sld [smem:[#allocation0]]
  $region30: #{my_sequential_forward.1} parent=0
    _
  %s8 = ssub.s32 1, %s6
  %s9 = scalar_select 0, %s8, %s6
  // Predicated region
  $region2: #{my_sequential_forward.1} parent=0 // pred_check
    _
  $region3: #{my_sequential_forward.1} parent=0 // pred_check_branch
    %11 = sbr.rel (0) target = $region5
  $region4: #{my_sequential_forward.1} parent=0 // pred_region
    _
  $region5: #{my_sequential_forward.1} parent=0 // pred_fallthru
    _
  // Predicated region
  $region6: #{my_sequential_forward.1} parent=0 // pred_check
    _
  $region7: #{my_sequential_forward.1} parent=0 // pred_check_branch
    %13 = sbr.rel (0) target = $region9
  $region8: #{my_sequential_forward.1} parent=0 // pred_region
    _
  $region9: #{my_sequential_forward.1} parent=0 // pred_fallthru
    _
  // Predicated region
  $region10: #{my_sequential_forward.1} parent=0 // pred_check
    _
  $region11: #{my_sequential_forward.1} parent=0 // pred_check_branch
    %15 = sbr.rel (0) target = $region13
  $region12: #{my_sequential_forward.1} parent=0 // pred_region
    _
  $region13: #{my_sequential_forward.1} parent=0 // pred_fallthru
    _
  // Predicated region
  $region14: #{my_sequential_forward.1} parent=0 // pred_check
    _
  $region15: #{my_sequential_forward.1} parent=0 // pred_check_branch
    %17 = sbr.rel (0) target = $region17
  $region16: #{my_sequential_forward.1} parent=0 // pred_region
    _
  $region17: #{my_sequential_forward.1} parent=0 // pred_fallthru
    _
  // Predicated region
  $region18: #{my_sequential_forward.1} parent=0 // pred_check
    _
  $region19: #{my_sequential_forward.1} parent=0 // pred_check_branch
    %19 = sbr.rel (0) target = $region21
  $region20: #{my_sequential_forward.1} parent=0 // pred_region
    _
  $region21: #{my_sequential_forward.1} parent=0 // pred_fallthru
    _
  %v21 = vld [vmem:[%s0] sm:$0xff]
  %v22 = vpack.c.bf16 %v21, %v21
  %v23 = vld [vmem:[%s1] sm:$0xff]
  %v24 = vld [vmem:[%s1 + $0x8] sm:$0xff]
  %v25 = vld [vmem:[%s1 + $0x10] sm:$0x33]
  %v26 = vld [vmem:[%s2] sm:$0x3]
  %v28 = vlaneseq
  %v29 = vshrl.u32 %v28, 7
  %v30 = vsub.s32 0, %v29
  %v31 = vrot.slane %v26, %v30
  %v32 = vlaneseq
  %v33 = vshrl.u32 %v32, 7
  %v34 = vsub.s32 1, %v33
  %v35 = vrot.slane %v26, %v34
  %v41 = vunpack.c.l.b16 %v23
  %v42 = vunpack.c.h.b16 %v23
  %v43 = vunpack.c.l.b16 %v24
  %v44 = vunpack.c.h.b16 %v24
  %v45 = vunpack.c.l.b16 %v25
  %v46 = vunpack.c.h.b16 %v25
  %v47 = vpack.c.b16 %v43, %v41
  %v48 = vpack.c.b16 %v44, %v42
  %v49 = vpack.c.b16 %v45, %v45
  %v50 = vpack.c.b16 %v46, %v46
  %vm53 = vcmask 162816
  %v55 = vsel %vm53, %v22, 0
  %vm57 = vcmask 1041408
  %v59 = vsel %vm57, %v49, 0
  %v62 = vsel %vm57, %v50, 0
  %64 = vmatprep.subr.bf16.mxu0 0
  %65 = vmatpush1.bf16.msra.mxu0 0
  %66 = vmatprep.subr.bf16.mxu0 0
  %67 = vmatpush1.bf16.msra.mxu0 0
  %68 = vmatprep.subr.bf16.mxu0 0
  %69 = vmatpush1.bf16.msra.mxu0 0
  %70 = vmatprep.subr.bf16.mxu0 0
  %71 = vmatpush1.bf16.msra.mxu0 0
  %72 = vmatprep.subr.bf16.mxu0 0
  %73 = vmatpush1.bf16.msra.mxu0 0
  %74 = vmatprep.subr.bf16.mxu0 0
  %75 = vmatpush1.bf16.msra.mxu0 0
  %76 = vmatprep.subr.bf16.mxu0 %v62
  %77 = vmatpush1.bf16.msra.mxu0 %v59
  %78 = vmatprep.subr.bf16.mxu0 %v48
  %79 = vmatpush1.bf16.msra.mxu0 %v47
  %80 = vmatprep.subr.bf16.mxu0 0
  %81 = vmatpush2.bf16.msra.mxu0 0
  %82 = vmatprep.subr.bf16.mxu0 0
  %83 = vmatpush2.bf16.msra.mxu0 0
  %84 = vmatprep.subr.bf16.mxu0 0
  %85 = vmatpush2.bf16.msra.mxu0 0
  %86 = vmatprep.subr.bf16.mxu0 0
  %87 = vmatpush2.bf16.msra.mxu0 0
  %88 = vmatprep.subr.bf16.mxu0 0
  %89 = vmatpush2.bf16.msra.mxu0 0
  %90 = vmatprep.subr.bf16.mxu0 0
  %91 = vmatpush2.bf16.msra.mxu0 0
  %92 = vmatprep.subr.bf16.mxu0 0
  %93 = vmatpush2.bf16.msra.mxu0 0
  %94 = vmatprep.subr.bf16.mxu0 0
  %95 = vmatpush2.bf16.msra.mxu0 0
  %96 = vmatprep.mubr.bf16.mxu0 0
  %97 = vmatmul.mubr.bf16.gmra.mxu0 %v55
  %v98 = vpop.f32.mrf.mxu0
  %v99 = vadd.f32 %v31, %v98
  %v100 = vpop.f32.mrf.mxu0
  %v101 = vadd.f32 %v35, %v100
  %v102 = vpop.f32.mrf.mxu0
  %v103 = vpop.f32.mrf.mxu0
  %104 = vdwg.mxu0
  %v105 = vmax.f32 %v99, 0.0
  %v106 = vmax.f32 %v101, 0.0
  %v107 = vpack.c.bf16 %v105, %v105
  %v108 = vpack.c.bf16 %v106, %v106
  %v109 = vld [vmem:[%s3] sm:$0xf]
  %v110 = vld [vmem:[%s3 + $0x4] sm:$0xf]
  %v111 = vld [vmem:[%s3 + $0x8] sm:$0xf]
  %v112 = vld [vmem:[%s3 + $0xc] sm:$0xf]
  %v113 = vld [vmem:[%s3 + $0x10] sm:$0xf]
  %v114 = vld [vmem:[%s3 + $0x14] sm:$0xf]
  %v115 = vld [vmem:[%s3 + $0x18] sm:$0xf]
  %v116 = vld [vmem:[%s3 + $0x1c] sm:$0xf]
  %v117 = vld [vmem:[%s3 + $0x20] sm:$0xf]
  %v118 = vld [vmem:[%s3 + $0x24] sm:$0xf]
  %v119 = vld [vmem:[%s3 + $0x28] sm:$0xf]
  %v120 = vld [vmem:[%s3 + $0x2c] sm:$0xf]
  %v121 = vld [vmem:[%s3 + $0x30] sm:$0xf]
  %v122 = vld [vmem:[%s3 + $0x34] sm:$0xf]
  %v123 = vld [vmem:[%s3 + $0x38] sm:$0xf]
  %v124 = vld [vmem:[%s3 + $0x3c] sm:$0xf]
  %v125 = vld [vmem:[%s3 + $0x40] sm:$0xf]
  %v126 = vld [vmem:[%s3 + $0x44] sm:$0xf]
  %v127 = vld [vmem:[%s3 + $0x48] sm:$0xf]
  %v128 = vld [vmem:[%s3 + $0x4c] sm:$0xf]
  %v129 = vld [vmem:[%s3 + $0x50] sm:$0xf]
  %v130 = vld [vmem:[%s3 + $0x54] sm:$0xf]
  %v131 = vld [vmem:[%s3 + $0x58] sm:$0xf]
  %v132 = vld [vmem:[%s3 + $0x5c] sm:$0xf]
  %v133 = vld [vmem:[%s3 + $0x60] sm:$0xf]
  %v134 = vld [vmem:[%s3 + $0x64] sm:$0xf]
  %v135 = vld [vmem:[%s3 + $0x68] sm:$0xf]
  %v136 = vld [vmem:[%s3 + $0x6c] sm:$0xf]
  %v137 = vld [vmem:[%s3 + $0x70] sm:$0xf]
  %v138 = vld [vmem:[%s3 + $0x74] sm:$0xf]
  %v139 = vld [vmem:[%s3 + $0x78] sm:$0xf]
  %v140 = vld [vmem:[%s3 + $0x7c] sm:$0xf]
  %v141 = vld [vmem:[%s4] sm:$0x1]
  %v143 = vlaneseq
  %v144 = vshrl.u32 %v143, 7
  %v145 = vsub.s32 0, %v144
  %v146 = vrot.slane %v141, %v145
  %v180 = vunpack.c.l.b16 %v109
  %v181 = vunpack.c.l.b16 %v110
  %v182 = vunpack.c.l.b16 %v111
  %v183 = vunpack.c.l.b16 %v112
  %v184 = vunpack.c.l.b16 %v113
  %v185 = vunpack.c.l.b16 %v114
  %v186 = vunpack.c.l.b16 %v115
  %v187 = vunpack.c.l.b16 %v116
  %v188 = vunpack.c.l.b16 %v117
  %v189 = vunpack.c.l.b16 %v118
  %v190 = vunpack.c.l.b16 %v119
  %v191 = vunpack.c.l.b16 %v120
  %v192 = vunpack.c.l.b16 %v121
  %v193 = vunpack.c.l.b16 %v122
  %v194 = vunpack.c.l.b16 %v123
  %v195 = vunpack.c.l.b16 %v124
  %v196 = vunpack.c.l.b16 %v125
  %v197 = vunpack.c.l.b16 %v126
  %v198 = vunpack.c.l.b16 %v127
  %v199 = vunpack.c.l.b16 %v128
  %v200 = vunpack.c.l.b16 %v129
  %v201 = vunpack.c.l.b16 %v130
  %v202 = vunpack.c.l.b16 %v131
  %v203 = vunpack.c.l.b16 %v132
  %v204 = vunpack.c.l.b16 %v133
  %v205 = vunpack.c.l.b16 %v134
  %v206 = vunpack.c.l.b16 %v135
  %v207 = vunpack.c.l.b16 %v136
  %v208 = vunpack.c.l.b16 %v137
  %v209 = vunpack.c.l.b16 %v138
  %v210 = vunpack.c.l.b16 %v139
  %v211 = vunpack.c.l.b16 %v140
  %v212 = vpack.c.b16 %v181, %v180
  %v213 = vpack.c.b16 %v183, %v182
  %v214 = vpack.c.b16 %v185, %v184
  %v215 = vpack.c.b16 %v187, %v186
  %v216 = vpack.c.b16 %v189, %v188
  %v217 = vpack.c.b16 %v191, %v190
  %v218 = vpack.c.b16 %v193, %v192
  %v219 = vpack.c.b16 %v195, %v194
  %v220 = vpack.c.b16 %v197, %v196
  %v221 = vpack.c.b16 %v199, %v198
  %v222 = vpack.c.b16 %v201, %v200
  %v223 = vpack.c.b16 %v203, %v202
  %v224 = vpack.c.b16 %v205, %v204
  %v225 = vpack.c.b16 %v207, %v206
  %v226 = vpack.c.b16 %v209, %v208
  %v227 = vpack.c.b16 %v211, %v210
  %244 = vmatprep.subr.bf16.mxu0 0
  %245 = vmatpush1.bf16.msra.mxu0 %v219
  %246 = vmatprep.subr.bf16.mxu0 0
  %247 = vmatpush1.bf16.msra.mxu0 %v218
  %248 = vmatprep.subr.bf16.mxu0 0
  %249 = vmatpush1.bf16.msra.mxu0 %v217
  %250 = vmatprep.subr.bf16.mxu0 0
  %251 = vmatpush1.bf16.msra.mxu0 %v216
  %252 = vmatprep.subr.bf16.mxu0 0
  %253 = vmatpush1.bf16.msra.mxu0 %v215
  %254 = vmatprep.subr.bf16.mxu0 0
  %255 = vmatpush1.bf16.msra.mxu0 %v214
  %256 = vmatprep.subr.bf16.mxu0 0
  %257 = vmatpush1.bf16.msra.mxu0 %v213
  %258 = vmatprep.subr.bf16.mxu0 0
  %259 = vmatpush1.bf16.msra.mxu0 %v212
  %260 = vmatprep.subr.bf16.mxu0 0
  %261 = vmatpush2.bf16.msra.mxu0 %v227
  %262 = vmatprep.subr.bf16.mxu0 0
  %263 = vmatpush2.bf16.msra.mxu0 %v226
  %264 = vmatprep.subr.bf16.mxu0 0
  %265 = vmatpush2.bf16.msra.mxu0 %v225
  %266 = vmatprep.subr.bf16.mxu0 0
  %267 = vmatpush2.bf16.msra.mxu0 %v224
  %268 = vmatprep.subr.bf16.mxu0 0
  %269 = vmatpush2.bf16.msra.mxu0 %v223
  %270 = vmatprep.subr.bf16.mxu0 0
  %271 = vmatpush2.bf16.msra.mxu0 %v222
  %272 = vmatprep.subr.bf16.mxu0 0
  %273 = vmatpush2.bf16.msra.mxu0 %v221
  %274 = vmatprep.subr.bf16.mxu0 0
  %275 = vmatpush2.bf16.msra.mxu0 %v220
  %276 = vmatprep.mubr.bf16.mxu0 %v108
  %277 = vmatmul.mubr.bf16.gmra.mxu0 %v107
  %v278 = vpop.f32.mrf.mxu0
  %v279 = vadd.f32 %v146, %v278
  %v280 = vpop.f32.mrf.mxu0
  %v281 = vpop.f32.mrf.mxu0
  %v282 = vpop.f32.mrf.mxu0
  %283 = vdwg.mxu0
  %vm284 = vcmask 80896
  %285 = vst.msk [vmem:[%s5] sm:$0xff] %vm284, %v279
  // Predicated region
  $region22: #{my_sequential_forward.1} parent=0 // pred_check
    _
  $region23: #{my_sequential_forward.1} parent=0 // pred_check_branch
    %287 = sbr.rel (0) target = $region25
  $region24: #{my_sequential_forward.1} parent=0 // pred_region
    _
  $region25: #{my_sequential_forward.1} parent=0 // pred_fallthru
    _
  // Predicated region
  $region26: #{my_sequential_forward.1} parent=0 // pred_check
    _
  $region27: #{my_sequential_forward.1} parent=0 // pred_check_branch
    %289 = sbr.rel (0) target = $region29
  $region28: #{my_sequential_forward.1} parent=0 // pred_region
    _
  $region29: #{my_sequential_forward.1} parent=0 // pred_fallthru
    _

</llo_original>
